<compile_context>
chip_gen: v5e
topology: v5e:2x2
jax: 0.10.0
libtpu: 0.0.40
codegen_flags: <defaults>
</compile_context>

<pallas_src>
import functools

import jax
import jax.numpy as jnp
from jax.experimental import pallas as pl
from jax.experimental.pallas import tpu as pltpu

IN_FEATURES = 10
HIDDEN = 5


def mlp_kernel(x_ref, w1_ref, b1_ref, w2_ref, b2_ref, o_ref):
    # Feature-major layout: batch lives on the lane axis.
    x = x_ref[...]                           # (10, TB) f32
    w1 = w1_ref[...]                         # (5, 10)  f32
    b1 = b1_ref[...]                         # (5, 1)   f32

    # Layer 1 on the MXU, f32 accumulation; bias broadcasts along lanes.
    h = jnp.dot(w1, x, preferred_element_type=jnp.float32) + b1   # (5, TB)
    h = jnp.maximum(h, 0.0)                                       # ReLU (VPU)

    # Layer 2: one VALU multiply + one XLU cross-sublane reduce.
    #   w2 is a (5, 1) VMEM column; b2 is a scalar in SMEM.
    z = jnp.sum(h * w2_ref[...], axis=0, keepdims=True) + b2_ref[0]   # (1, TB)

    # Sigmoid via tanh: single EUP op, exact (matches jax.nn.sigmoid).
    o_ref[...] = 0.5 * jnp.tanh(0.5 * z) + 0.5                        # lane-dense store


def _round_up(x, m):
    return ((x + m - 1) // m) * m


def _choose_tile(batch, tile_cap):
    """Batch tile on the lane axis: multiple of 128, capped, and aiming for a
    grid of >= 4 steps on large batches so v7x's two TensorCores both run."""
    bp128 = _round_up(batch, 128)
    tb = min(int(tile_cap), _round_up(pl.cdiv(bp128, 4), 128))
    tb = max(tb, 128)
    return _round_up(tb, 128)


@functools.partial(jax.jit, static_argnames=("tile_b",))
def binary_classifier_forward_feature_major(xt, w1, b1, w2, b2, *, tile_b=65536):
    """Forward pass, feature-major input (no transpose pass needed).

    xt: (10, B) f32   (batch on the fast axis)
    w1: (5, 10) f32   (torch layer1.weight)
    b1: (5,)    f32
    w2: (1, 5)  f32   (torch layer2.weight)
    b2: (1,)    f32
    returns (1, B) f32.
    """
    F, B = xt.shape
    assert F == IN_FEATURES

    tb = _choose_tile(B, tile_b)
    Bp = _round_up(B, tb)

    xt = jnp.asarray(xt, jnp.float32)
    if Bp != B:
        xt = jnp.pad(xt, ((0, 0), (0, Bp - B)))        # pad lanes; sliced off below

    w1m = jnp.asarray(w1, jnp.float32).reshape(HIDDEN, IN_FEATURES)
    b1c = jnp.asarray(b1, jnp.float32).reshape(HIDDEN, 1)
    w2c = jnp.asarray(w2, jnp.float32).reshape(HIDDEN, 1)   # VMEM column
    b2v = jnp.asarray(b2, jnp.float32).reshape(1)           # scalar -> SMEM

    smem = pl.BlockSpec(memory_space=pltpu.MemorySpace.SMEM)

    out_t = pl.pallas_call(
        mlp_kernel,
        out_shape=jax.ShapeDtypeStruct((1, Bp), jnp.float32),
        grid=(Bp // tb,),
        in_specs=[
            pl.BlockSpec((IN_FEATURES, tb), lambda i: (0, i)),      # x: pipelined tiles
            pl.BlockSpec((HIDDEN, IN_FEATURES), lambda i: (0, 0)),  # w1: resident
            pl.BlockSpec((HIDDEN, 1), lambda i: (0, 0)),            # b1: resident
            pl.BlockSpec((HIDDEN, 1), lambda i: (0, 0)),            # w2: resident column
            smem,                                                   # b2 scalar
        ],
        out_specs=pl.BlockSpec((1, tb), lambda i: (0, i)),          # lane-dense output
        compiler_params=pltpu.CompilerParams(
            dimension_semantics=("parallel",)),                     # megacore on v7x
        cost_estimate=pl.CostEstimate(
            flops=120 * Bp, transcendentals=Bp, bytes_accessed=44 * Bp + 256),
    )(xt, w1m, b1c, w2c, b2v)

    return out_t[:, :B]                                    # (1, B)


@functools.partial(jax.jit, static_argnames=("tile_b",))
def binary_classifier_forward(x, w1, b1, w2, b2, *, tile_b=65536):
    """PyTorch-layout forward: x (B, 10) -> (B, 1), identical semantics to the
    nn.Module. The transpose happens inside this jit; callers who can produce
    feature-major data should call binary_classifier_forward_feature_major."""
    B, F = x.shape
    assert F == IN_FEATURES
    xt = jnp.asarray(x, jnp.float32).T                     # (10, B)
    out = binary_classifier_forward_feature_major(xt, w1, b1, w2, b2, tile_b=tile_b)
    return out.T                                           # (B, 1)


def init_params(key):
    """Deterministic init mimicking nn.Linear's uniform(-1/sqrt(fan_in), ...)."""
    k1, k2, k3, k4 = jax.random.split(key, 4)
    bound1 = 1.0 / jnp.sqrt(float(IN_FEATURES))
    bound2 = 1.0 / jnp.sqrt(float(HIDDEN))
    w1 = jax.random.uniform(k1, (HIDDEN, IN_FEATURES), jnp.float32, -bound1, bound1)
    b1 = jax.random.uniform(k2, (HIDDEN,), jnp.float32, -bound1, bound1)
    w2 = jax.random.uniform(k3, (1, HIDDEN), jnp.float32, -bound2, bound2)
    b2 = jax.random.uniform(k4, (1,), jnp.float32, -bound2, bound2)
    return w1, b1, w2, b2


def reference_forward(x, w1, b1, w2, b2):
    h = jnp.maximum(x @ w1.T + b1, 0.0)
    return jax.nn.sigmoid(h @ w2.T + b2)


if __name__ == "__main__":
    key = jax.random.PRNGKey(0)
    k_x, k_p = jax.random.split(key)
    w1, b1, w2, b2 = init_params(k_p)

    # Matches the module's reference input torch.rand(100, 10): single 128-lane tile.
    x = jax.random.uniform(k_x, (100, IN_FEATURES), jnp.float32)
    out = jax.block_until_ready(binary_classifier_forward(x, w1, b1, w2, b2))
    ref = reference_forward(x, w1, b1, w2, b2)
    assert out.shape == (100, 1)
    assert jnp.allclose(out, ref, atol=1e-5, rtol=1e-5)

    # Multi-tile path: auto-picked tile of 256 lanes -> grid of 4 batch tiles
    # plus padded tail column handling; exercises the "parallel" grid axis.
    x2 = jax.random.uniform(k_x, (1000, IN_FEATURES), jnp.float32)
    out2 = jax.block_until_ready(binary_classifier_forward(x2, w1, b1, w2, b2))
    ref2 = reference_forward(x2, w1, b1, w2, b2)
    assert out2.shape == (1000, 1)
    assert jnp.allclose(out2, ref2, atol=1e-5, rtol=1e-5)

    # Feature-major entry (review option (a)): no transpose pass at all.
    out3 = jax.block_until_ready(
        binary_classifier_forward_feature_major(x2.T, w1, b1, w2, b2))
    assert out3.shape == (1, 1000)
    assert jnp.allclose(out3.T, ref2, atol=1e-5, rtol=1e-5)

    print("KERNEL_OK")
</pallas_src>

<mosaic_0001>
module attributes {stable_mosaic.version = 11 : i64} {
  func.func @mlp_kernel(%arg0: i32, %arg1: memref<10x128xf32, #tpu.memory_space<vmem>>, %arg2: memref<5x10xf32, #tpu.memory_space<vmem>>, %arg3: memref<5x1xf32, #tpu.memory_space<vmem>>, %arg4: memref<5x1xf32, #tpu.memory_space<vmem>>, %arg5: memref<1xf32, #tpu.memory_space<smem>>, %arg6: memref<1x128xf32, #tpu.memory_space<vmem>>) attributes {dimension_semantics = [#tpu.dimension_semantics<parallel>], iteration_bounds = array<i64: 1>, scalar_prefetch = 0 : i64, scratch_operands = 0 : i64, tpu.core_type = #tpu.core_type<tc>, window_params = [{transform_indices = @transform_0, window_bounds = array<i64: 10, 128>}, {pipeline_mode = #tpu.pipeline_mode<synchronous>, transform_indices = @transform_1, window_bounds = array<i64: 5, 10>}, {pipeline_mode = #tpu.pipeline_mode<synchronous>, transform_indices = @transform_2, window_bounds = array<i64: 5, 1>}, {pipeline_mode = #tpu.pipeline_mode<synchronous>, transform_indices = @transform_3, window_bounds = array<i64: 5, 1>}, {transform_indices = @transform_4, window_bounds = array<i64: 1>}, {transform_indices = @transform_5, window_bounds = array<i64: 1, 128>}]} {
    %c0 = arith.constant 0 : index
    %c0_0 = arith.constant 0 : index
    %0 = vector.load %arg1[%c0, %c0_0] : memref<10x128xf32, #tpu.memory_space<vmem>>, vector<10x128xf32>
    %c0_1 = arith.constant 0 : index
    %c0_2 = arith.constant 0 : index
    %1 = vector.load %arg2[%c0_1, %c0_2] : memref<5x10xf32, #tpu.memory_space<vmem>>, vector<5x10xf32>
    %c0_3 = arith.constant 0 : index
    %c0_4 = arith.constant 0 : index
    %2 = vector.load %arg3[%c0_3, %c0_4] : memref<5x1xf32, #tpu.memory_space<vmem>>, vector<5x1xf32>
    %cst = arith.constant dense<0.000000e+00> : vector<5x128xf32>
    %3 = tpu.matmul %1, %0, %cst {dimension_numbers = #tpu.dot_dimension_numbers<[1], [0], [0], [1], [0, 0, 1, 1], [], []>} : vector<5x10xf32>, vector<10x128xf32>, vector<5x128xf32> -> vector<5x128xf32>
    %4 = vector.broadcast %2 : vector<5x1xf32> to vector<5x128xf32>
    %5 = arith.addf %3, %4 : vector<5x128xf32>
    %cst_5 = arith.constant 0.000000e+00 : f32
    %6 = vector.broadcast %cst_5 : f32 to vector<5x128xf32>
    %7 = arith.maximumf %5, %6 : vector<5x128xf32>
    %c0_6 = arith.constant 0 : index
    %c0_7 = arith.constant 0 : index
    %8 = vector.load %arg4[%c0_6, %c0_7] : memref<5x1xf32, #tpu.memory_space<vmem>>, vector<5x1xf32>
    %9 = vector.broadcast %8 : vector<5x1xf32> to vector<5x128xf32>
    %10 = arith.mulf %7, %9 : vector<5x128xf32>
    %cst_8 = arith.constant dense<0.000000e+00> : vector<128xf32>
    %11 = vector.multi_reduction <add>, %10, %cst_8 [0] : vector<5x128xf32> to vector<128xf32>
    %12 = vector.shape_cast %11 : vector<128xf32> to vector<1x128xf32>
    %c0_9 = arith.constant 0 : index
    %13 = memref.load %arg5[%c0_9] : memref<1xf32, #tpu.memory_space<smem>>
    %14 = vector.broadcast %13 : f32 to vector<1x128xf32>
    %15 = arith.addf %12, %14 : vector<1x128xf32>
    %cst_10 = arith.constant 5.000000e-01 : f32
    %16 = vector.broadcast %cst_10 : f32 to vector<1x128xf32>
    %17 = arith.mulf %16, %15 : vector<1x128xf32>
    %18 = math.tanh %17 : vector<1x128xf32>
    %cst_11 = arith.constant 5.000000e-01 : f32
    %19 = vector.broadcast %cst_11 : f32 to vector<1x128xf32>
    %20 = arith.mulf %19, %18 : vector<1x128xf32>
    %cst_12 = arith.constant 5.000000e-01 : f32
    %21 = vector.broadcast %cst_12 : f32 to vector<1x128xf32>
    %22 = arith.addf %20, %21 : vector<1x128xf32>
    %c0_13 = arith.constant 0 : index
    %c0_14 = arith.constant 0 : index
    %23 = vector.load %arg6[%c0_13, %c0_14] : memref<1x128xf32, #tpu.memory_space<vmem>>, vector<1x128xf32>
    tpu.vector_store %arg6[%c0_13, %c0_14], %22 {strides = array<i32>} : memref<1x128xf32, #tpu.memory_space<vmem>>, vector<1x128xf32>,
    return
  }
  func.func @transform_0(%arg0: i32) -> (i32, i32) {
    %c0_i32 = arith.constant 0 : i32
    %c0_i32_0 = arith.constant 0 : i32
    return %c0_i32, %arg0 : i32, i32
  }
  func.func @transform_1(%arg0: i32) -> (i32, i32) {
    %c0_i32 = arith.constant 0 : i32
    %c0_i32_0 = arith.constant 0 : i32
    %c0_i32_1 = arith.constant 0 : i32
    return %c0_i32, %c0_i32_0 : i32, i32
  }
  func.func @transform_2(%arg0: i32) -> (i32, i32) {
    %c0_i32 = arith.constant 0 : i32
    %c0_i32_0 = arith.constant 0 : i32
    %c0_i32_1 = arith.constant 0 : i32
    return %c0_i32, %c0_i32_0 : i32, i32
  }
  func.func @transform_3(%arg0: i32) -> (i32, i32) {
    %c0_i32 = arith.constant 0 : i32
    %c0_i32_0 = arith.constant 0 : i32
    %c0_i32_1 = arith.constant 0 : i32
    return %c0_i32, %c0_i32_0 : i32, i32
  }
  func.func @transform_4(%arg0: i32) -> i32 {
    %c0_i32 = arith.constant 0 : i32
    %c0_i32_0 = arith.constant 0 : i32
    return %c0_i32 : i32
  }
  func.func @transform_5(%arg0: i32) -> (i32, i32) {
    %c0_i32 = arith.constant 0 : i32
    %c0_i32_0 = arith.constant 0 : i32
    return %c0_i32, %arg0 : i32, i32
  }
}

</mosaic_0001>

<llo_original>
// kernel: binary_classifier_forward_feature_major.1
$region0: #{binary_classifier_forward_feature_major.1}
  #allocation0 [shape = 'u32[]', space=smem, size = 0x4, offset = 0x4, fixed_abs, tag = 'smem constant byte address 0x4 - core index']
  #allocation1 [shape = 'u32[72,128]{1,0:T(1,128)}', space=vmem, size = 0x9000, scoped, tag = 'internal scratch']
  #allocation2 [shape = 'f32[1]{0:T(128)S(6)}', space=smem, size = 0x200, scoped, tag = 'scoped memory for binary_classifier_forward_feature_major.1']
  %s0 = inlined_call_operand.vmem [shape: f32[10,128], index: 0, kind: input, shape index: {}]
  %s1 = inlined_call_operand.vmem [shape: f32[5,10], index: 1, kind: input, shape index: {}]
  %s2 = inlined_call_operand.vmem [shape: f32[5,1], index: 2, kind: input, shape index: {}]
  %s3 = inlined_call_operand.vmem [shape: f32[5,1], index: 3, kind: input, shape index: {}]
  %s4 = inlined_call_operand.<no memory space> [shape: f32[1], index: 4, kind: input, shape index: {}]
  %s5 = inlined_call_operand.hbm [shape: f32[1,128], index: 5, kind: output, shape index: {}]
  %s6 = sld [smem:[#allocation0]]
  $region30: #{binary_classifier_forward_feature_major.1} parent=0
    _
  %s8 = ssub.s32 1, %s6
  %s9 = scalar_select 0, %s8, %s6
  %10 = sst [smem:[#allocation2]] %s4
  $region1: #{binary_classifier_forward_feature_major.1} parent=0
    #allocation3 [shape = 'u8[512]{0}', space=vmem, size = 0x400, scoped, tag = 'output window, operand 0, single buffered']
    #allocation4 [shape = 's32[1]{0}', space=sflag, size = 0x4, scoped, tag = 'scoped memory for binary_classifier_forward_feature_major.1']
    %11 = vsyncpa [#allocation4], 0
    // Predicated region
    $region2: #{binary_classifier_forward_feature_major.1} parent=1 // pred_check
      _
    $region3: #{binary_classifier_forward_feature_major.1} parent=1 // pred_check_branch
      %13 = sbr.rel (0) target = $region5
    $region4: #{binary_classifier_forward_feature_major.1} parent=1 // pred_region
      _
    $region5: #{binary_classifier_forward_feature_major.1} parent=1 // pred_fallthru
      _
    // Predicated region
    $region6: #{binary_classifier_forward_feature_major.1} parent=1 // pred_check
      _
    $region7: #{binary_classifier_forward_feature_major.1} parent=1 // pred_check_branch
      %15 = sbr.rel (0) target = $region9
    $region8: #{binary_classifier_forward_feature_major.1} parent=1 // pred_region
      _
    $region9: #{binary_classifier_forward_feature_major.1} parent=1 // pred_fallthru
      _
    // Predicated region
    $region10: #{binary_classifier_forward_feature_major.1} parent=1 // pred_check
      _
    $region11: #{binary_classifier_forward_feature_major.1} parent=1 // pred_check_branch
      %17 = sbr.rel (0) target = $region13
    $region12: #{binary_classifier_forward_feature_major.1} parent=1 // pred_region
      _
    $region13: #{binary_classifier_forward_feature_major.1} parent=1 // pred_fallthru
      _
    // Predicated region
    $region14: #{binary_classifier_forward_feature_major.1} parent=1 // pred_check
      _
    $region15: #{binary_classifier_forward_feature_major.1} parent=1 // pred_check_branch
      %19 = sbr.rel (0) target = $region17
    $region16: #{binary_classifier_forward_feature_major.1} parent=1 // pred_region
      _
    $region17: #{binary_classifier_forward_feature_major.1} parent=1 // pred_fallthru
      _
    // Predicated region
    $region18: #{binary_classifier_forward_feature_major.1} parent=1 // pred_check
      _
    $region19: #{binary_classifier_forward_feature_major.1} parent=1 // pred_check_branch
      %21 = sbr.rel (0) target = $region21
    $region20: #{binary_classifier_forward_feature_major.1} parent=1 // pred_region
      _
    $region21: #{binary_classifier_forward_feature_major.1} parent=1 // pred_fallthru
      _
    %v22 = vld [vmem:[%s0] sm:$0xff]
    %v23 = vld [vmem:[%s0 + $0x8] sm:$0x3]
    %v24 = vld [vmem:[%s1] sm:$0x1f]
    %v25 = vld [vmem:[%s2] sm:$0x1f]
    %27 = vset.pattern.permute.xlu0 0
    %28 = vperm.xlu0 %27, %v25
    %v29 = vpop.permute.xlu0 %28
    %vm31 = vcmask 80896
    %v33 = vsel %vm31, %v24, 0
    %vm35 = vcmask 1041408
    %v37 = vsel %vm35, %v23, 0
    %39 = vmatpush.msra.mxu0 0.0
    %40 = vmatpush.msra.mxu0 0.0
    %41 = vmatpush.msra.mxu0 0.0
    %42 = vmatpush.msra.mxu0 0.0
    %43 = vmatpush.msra.mxu0 0.0
    %44 = vmatpush.msra.mxu0 0.0
    %45 = vmatpush.msra.mxu0 0.0
    %46 = vmatpush.msra.mxu0 0.0
    %47 = vmatpush.msra.mxu0 0.0
    %48 = vmatpush.msra.mxu0 0.0
    %49 = vmatpush.msra.mxu0 0.0
    %50 = vmatpush.msra.mxu0 0.0
    %51 = vmatpush.msra.mxu0 0.0
    %52 = vmatpush.msra.mxu0 0.0
    %53 = vmatpush.msra.mxu0 %v37
    %54 = vmatpush.msra.mxu0 %v22
    %55 = vmatmul.f32.gmra.mxu0 %v33
    %v56 = vpop.f32.mrf.mxu0
    %v57 = vadd.f32 %v29, %v56
    %58 = vdwg.mxu0
    %v59 = vmax.f32 %v57, 0.0
    %v60 = vld [vmem:[%s3] sm:$0x1f]
    %62 = vset.pattern.permute.xlu0 0
    %63 = vperm.xlu0 %62, %v60
    %v64 = vpop.permute.xlu0 %63
    %v66 = vmul.f32 %v59, %v64
    %vm67 = vcmask 1044480
    %v68 = vsel %vm67, %v66, 0.0
    %v69 = vrot.slane %v68, 4
    %v70 = vadd.f32 %v68, %v69
    %v71 = vrot.slane %v70, 2
    %v72 = vadd.f32 %v70, %v71
    %v73 = vrot.slane %v72, 1
    %v74 = vadd.f32 %v72, %v73
    %s75 = sld [smem:[#allocation2]]
    %v76 = vstv %s75
    %v77 = vadd.f32 %v74, %v76
    %v78 = vmul.f32 %v77, 0.5
    %v79 = vtanh.pop %v78
    %v80 = vmul.f32 %v79, 0.5
    %v81 = vadd.f32 %v80, 0.5
    %82 = vst [vmem:[#allocation3] sm:$0x1] %v81
    // Predicated region
    $region22: #{binary_classifier_forward_feature_major.1} parent=1 // pred_check
      _
    $region23: #{binary_classifier_forward_feature_major.1} parent=1 // pred_check_branch
      %84 = sbr.rel (0) target = $region25
    $region24: #{binary_classifier_forward_feature_major.1} parent=1 // pred_region
      %86 = vsyncadd [#allocation4], 0
      %s88 = sshll.u32 [#allocation3], 4
      %s89 = int_to_ptr.vmem [resolvable:$true] %s88
      %s90 = sshll.u32 %s5, 4
      %s91 = int_to_ptr.hbm [resolvable:$true] %s90
      %93 = dma.vmem_to_hbm [thread:$0]  %s89, 16, %s91, [#allocation4]
    $region25: #{binary_classifier_forward_feature_major.1} parent=1 // pred_fallthru
      _
    // Predicated region
    $region26: #{binary_classifier_forward_feature_major.1} parent=1 // pred_check
      _
    $region27: #{binary_classifier_forward_feature_major.1} parent=1 // pred_check_branch
      %95 = sbr.rel (0) target = $region29
    $region28: #{binary_classifier_forward_feature_major.1} parent=1 // pred_region
      %97 = dma.done [#allocation4], 16
    $region29: #{binary_classifier_forward_feature_major.1} parent=1 // pred_fallthru
      _
    %98 = vsyncpa [#allocation4], 1

</llo_original>
